<compile_context>
chip_gen: v7x
topology: tpu7x:2x2x1
jax: 0.10.0
libtpu: 0.0.40
codegen_flags: <defaults>
</compile_context>

<pallas_src>
import jax
import jax.numpy as jnp
from jax.experimental import pallas as pl
from jax.experimental.pallas import tpu as pltpu

T = 1.0
EPS = 1e-8          # only used by the reference; see log-sum-exp note above.
_NEG_FILL = -1e30   # padding fill value (exp underflows to exactly 0 in f32).


def _make_entropy_kernel(r_real, c_real, t):
    """Kernel closure over the static (unpadded) row/col counts and T."""

    def kernel(x_ref, o_ref):
        x = x_ref[...].astype(jnp.float32)          # (Bb, Rp, Cp)
        if t != 1.0:                                # static skip of the *T multiply
            x = x * jnp.float32(t)
        _, rp, cp = x_ref.shape

        # --- entropy of softmax over rows (dim=-2): one distribution per column ---
        m_r = jnp.max(x, axis=-2, keepdims=True)                 # (Bb, 1, Cp)
        xs_r = x - m_r
        e_r = jnp.exp(xs_r)
        s_r = jnp.sum(e_r, axis=-2, keepdims=True)               # (Bb, 1, Cp)
        d_r = jnp.sum(e_r * xs_r, axis=-2, keepdims=True)        # (Bb, 1, Cp)
        h_r = jnp.log(s_r) - d_r / s_r                           # per-column entropy
        if cp != c_real:  # mask padded columns (static branch)
            col_ids = jax.lax.broadcasted_iota(jnp.int32, h_r.shape, 2)
            h_r = jnp.where(col_ids < c_real, h_r, jnp.float32(0.0))
        row_sum = jnp.sum(h_r)

        # --- entropy of softmax over columns (dim=-1): one distribution per row ---
        m_c = jnp.max(x, axis=-1, keepdims=True)                 # (Bb, Rp, 1)
        xs_c = x - m_c
        e_c = jnp.exp(xs_c)
        s_c = jnp.sum(e_c, axis=-1, keepdims=True)               # (Bb, Rp, 1)
        d_c = jnp.sum(e_c * xs_c, axis=-1, keepdims=True)        # (Bb, Rp, 1)
        h_c = jnp.log(s_c) - d_c / s_c                           # per-row entropy
        if rp != r_real:  # mask padded rows (static branch)
            row_ids = jax.lax.broadcasted_iota(jnp.int32, h_c.shape, 1)
            h_c = jnp.where(row_ids < r_real, h_c, jnp.float32(0.0))
        col_sum = jnp.sum(h_c)

        # Lane-dense partial-sum tile: lane 0 = row partial, lane 1 = col partial.
        lane = jax.lax.broadcasted_iota(jnp.int32, o_ref.shape, 2)
        o_ref[...] = jnp.where(lane == 0, row_sum,
                               jnp.where(lane == 1, col_sum, jnp.float32(0.0)))

    return kernel


def _pick_batch_block(b, rp, cp, target_bytes=2 * 1024 * 1024):
    """Largest divisor of b whose f32 block fits the per-step size target."""
    per_batch = rp * cp * 4
    best = 1
    for bb in range(1, b + 1):
        if b % bb == 0 and bb * per_batch <= target_bytes:
            best = bb
    return best


@jax.jit
def entropy_loss(x):
    """x: (B, R, C) float array. Returns scalar float32 loss."""
    B, R, C = x.shape
    Rp = ((R + 7) // 8) * 8
    Cp = ((C + 127) // 128) * 128

    if (Rp, Cp) != (R, C):
        xp = jnp.pad(x, ((0, 0), (0, Rp - R), (0, Cp - C)),
                     constant_values=_NEG_FILL)
    else:
        xp = x

    Bb = _pick_batch_block(B, Rp, Cp)
    nb = B // Bb

    partials = pl.pallas_call(
        _make_entropy_kernel(R, C, T),
        out_shape=jax.ShapeDtypeStruct((nb, 8, 128), jnp.float32),
        grid=(nb,),
        in_specs=[pl.BlockSpec((Bb, Rp, Cp), lambda b: (b, 0, 0))],
        out_specs=pl.BlockSpec((1, 8, 128), lambda b: (b, 0, 0)),
        compiler_params=pltpu.CompilerParams(
            dimension_semantics=("parallel",),
            vmem_limit_bytes=32 * 1024 * 1024,
        ),
    )(xp)

    row_total = jnp.sum(partials[:, 0, 0])   # sum of per-(batch, column) entropies
    col_total = jnp.sum(partials[:, 0, 1])   # sum of per-(batch, row) entropies
    return row_total / jnp.float32(B * C) + col_total / jnp.float32(B * R)


def entropy_loss_ref(x):
    """Pure-JAX reference matching the PyTorch module exactly (incl. eps)."""
    x = x.astype(jnp.float32)

    def ent(x, axis):
        p = jax.nn.softmax(x * T, axis=axis)
        return jnp.mean(-jnp.sum(p * jnp.log(p + EPS), axis=axis))

    return ent(x, -2) + ent(x, -1)


if __name__ == "__main__":
    key = jax.random.PRNGKey(0)

    # Aligned small shape: (batch, rows, cols)
    x = jax.random.normal(key, (2, 16, 128), dtype=jnp.float32)
    out = jax.block_until_ready(entropy_loss(x))
    ref = entropy_loss_ref(x)
    assert jnp.allclose(out, ref, rtol=1e-5, atol=1e-5), (out, ref)

    # Unaligned shape exercises the pad + mask path.
    x2 = jax.random.normal(jax.random.PRNGKey(1), (3, 12, 100), dtype=jnp.float32)
    out2 = jax.block_until_ready(entropy_loss(x2))
    ref2 = entropy_loss_ref(x2)
    assert jnp.allclose(out2, ref2, rtol=1e-5, atol=1e-5), (out2, ref2)

    print("KERNEL_OK")
</pallas_src>

<mosaic_0001>
module attributes {stable_mosaic.version = 11 : i64} {
  func.func @kernel(%arg0: i32, %arg1: memref<2x16x128xf32, #tpu.memory_space<vmem>>, %arg2: memref<1x8x128xf32, #tpu.memory_space<vmem>>) attributes {dimension_semantics = [#tpu.dimension_semantics<parallel>], iteration_bounds = array<i64: 1>, scalar_prefetch = 0 : i64, scratch_operands = 0 : i64, tpu.core_type = #tpu.core_type<tc>, window_params = [{transform_indices = @transform_0, window_bounds = array<i64: 2, 16, 128>}, {transform_indices = @transform_1, window_bounds = array<i64: 1, 8, 128>}]} {
    %c0 = arith.constant 0 : index
    %c0_0 = arith.constant 0 : index
    %c0_1 = arith.constant 0 : index
    %0 = vector.load %arg1[%c0, %c0_0, %c0_1] : memref<2x16x128xf32, #tpu.memory_space<vmem>>, vector<2x16x128xf32>
    %cst = arith.constant dense<0xFF800000> : vector<2x128xf32>
    %1 = vector.multi_reduction <maximumf>, %0, %cst [1] : vector<2x16x128xf32> to vector<2x128xf32>
    %2 = vector.shape_cast %1 : vector<2x128xf32> to vector<2x1x128xf32>
    %3 = vector.broadcast %2 : vector<2x1x128xf32> to vector<2x16x128xf32>
    %4 = arith.subf %0, %3 : vector<2x16x128xf32>
    %5 = math.exp %4 : vector<2x16x128xf32>
    %cst_2 = arith.constant dense<0.000000e+00> : vector<2x128xf32>
    %6 = vector.multi_reduction <add>, %5, %cst_2 [1] : vector<2x16x128xf32> to vector<2x128xf32>
    %7 = vector.shape_cast %6 : vector<2x128xf32> to vector<2x1x128xf32>
    %8 = arith.mulf %5, %4 : vector<2x16x128xf32>
    %cst_3 = arith.constant dense<0.000000e+00> : vector<2x128xf32>
    %9 = vector.multi_reduction <add>, %8, %cst_3 [1] : vector<2x16x128xf32> to vector<2x128xf32>
    %10 = vector.shape_cast %9 : vector<2x128xf32> to vector<2x1x128xf32>
    %11 = math.log %7 : vector<2x1x128xf32>
    %12 = arith.divf %10, %7 : vector<2x1x128xf32>
    %13 = arith.subf %11, %12 : vector<2x1x128xf32>
    %14 = vector.shape_cast %13 : vector<2x1x128xf32> to vector<1x2x1x128xf32>
    %cst_4 = arith.constant dense<0.000000e+00> : vector<1xf32>
    %15 = vector.multi_reduction <add>, %14, %cst_4 [1, 2, 3] : vector<1x2x1x128xf32> to vector<1xf32>
    %16 = vector.shape_cast %15 : vector<1xf32> to vector<1x1x1x1xf32>
    %17 = vector.extract %16[0, 0, 0, 0] : f32 from vector<1x1x1x1xf32>
    %cst_5 = arith.constant dense<0xFF800000> : vector<2x16xf32>
    %18 = vector.multi_reduction <maximumf>, %0, %cst_5 [2] : vector<2x16x128xf32> to vector<2x16xf32>
    %19 = vector.shape_cast %18 : vector<2x16xf32> to vector<2x16x1xf32>
    %20 = vector.broadcast %19 : vector<2x16x1xf32> to vector<2x16x128xf32>
    %21 = arith.subf %0, %20 : vector<2x16x128xf32>
    %22 = math.exp %21 : vector<2x16x128xf32>
    %cst_6 = arith.constant dense<0.000000e+00> : vector<2x16xf32>
    %23 = vector.multi_reduction <add>, %22, %cst_6 [2] : vector<2x16x128xf32> to vector<2x16xf32>
    %24 = vector.shape_cast %23 : vector<2x16xf32> to vector<2x16x1xf32>
    %25 = arith.mulf %22, %21 : vector<2x16x128xf32>
    %cst_7 = arith.constant dense<0.000000e+00> : vector<2x16xf32>
    %26 = vector.multi_reduction <add>, %25, %cst_7 [2] : vector<2x16x128xf32> to vector<2x16xf32>
    %27 = vector.shape_cast %26 : vector<2x16xf32> to vector<2x16x1xf32>
    %28 = math.log %24 : vector<2x16x1xf32>
    %29 = arith.divf %27, %24 : vector<2x16x1xf32>
    %30 = arith.subf %28, %29 : vector<2x16x1xf32>
    %31 = vector.shape_cast %30 : vector<2x16x1xf32> to vector<1x2x16x1xf32>
    %cst_8 = arith.constant dense<0.000000e+00> : vector<1xf32>
    %32 = vector.multi_reduction <add>, %31, %cst_8 [1, 2, 3] : vector<1x2x16x1xf32> to vector<1xf32>
    %33 = vector.shape_cast %32 : vector<1xf32> to vector<1x1x1x1xf32>
    %34 = vector.extract %33[0, 0, 0, 0] : f32 from vector<1x1x1x1xf32>
    %35 = tpu.iota {dimensions = array<i32: 2>} : vector<1x8x128xi32>
    %c0_i32 = arith.constant 0 : i32
    %36 = vector.broadcast %c0_i32 : i32 to vector<1x8x128xi32>
    %37 = arith.cmpi eq, %35, %36 : vector<1x8x128xi32>
    %c1_i32 = arith.constant 1 : i32
    %38 = vector.broadcast %c1_i32 : i32 to vector<1x8x128xi32>
    %39 = arith.cmpi eq, %35, %38 : vector<1x8x128xi32>
    %cst_9 = arith.constant 0.000000e+00 : f32
    %40 = vector.broadcast %34 : f32 to vector<1x8x128xf32>
    %41 = vector.broadcast %cst_9 : f32 to vector<1x8x128xf32>
    %42 = arith.select %39, %40, %41 : vector<1x8x128xi1>, vector<1x8x128xf32>
    %43 = vector.broadcast %17 : f32 to vector<1x8x128xf32>
    %44 = arith.select %37, %43, %42 : vector<1x8x128xi1>, vector<1x8x128xf32>
    %c0_10 = arith.constant 0 : index
    %c0_11 = arith.constant 0 : index
    %c0_12 = arith.constant 0 : index
    %45 = vector.load %arg2[%c0_10, %c0_11, %c0_12] : memref<1x8x128xf32, #tpu.memory_space<vmem>>, vector<1x8x128xf32>
    tpu.vector_store %arg2[%c0_10, %c0_11, %c0_12], %44 {strides = array<i32>} : memref<1x8x128xf32, #tpu.memory_space<vmem>>, vector<1x8x128xf32>,
    return
  }
  func.func @transform_0(%arg0: i32) -> (i32, i32, i32) {
    %c0_i32 = arith.constant 0 : i32
    %c0_i32_0 = arith.constant 0 : i32
    %c0_i32_1 = arith.constant 0 : i32
    return %arg0, %c0_i32, %c0_i32_0 : i32, i32, i32
  }
  func.func @transform_1(%arg0: i32) -> (i32, i32, i32) {
    %c0_i32 = arith.constant 0 : i32
    %c0_i32_0 = arith.constant 0 : i32
    %c0_i32_1 = arith.constant 0 : i32
    return %arg0, %c0_i32, %c0_i32_0 : i32, i32, i32
  }
}

</mosaic_0001>

<llo_original>
// kernel: entropy_loss.1
$region0: #{entropy_loss.1}
  #allocation0 [shape = 'u32[]', space=smem, size = 0x4, offset = 0x4, fixed_abs, tag = 'smem constant byte address 0x4 - core index']
  #allocation1 [shape = 'u32[144,128]{1,0:T(1,128)}', space=vmem, size = 0x12000, scoped, tag = 'internal scratch']
  %s0 = inlined_call_operand.hbm [shape: f32[2,16,128], index: 0, kind: input, shape index: {}]
  %s1 = inlined_call_operand.vmem [shape: f32[1,8,128], index: 1, kind: output, shape index: {}]
  %s2 = sld [smem:[#allocation0]]
  $region18: #{entropy_loss.1} parent=0
    _
  %s4 = ssub.s32 1, %s2
  %s5 = scalar_select 0, %s4, %s2
  $region1: #{entropy_loss.1} parent=0
    #allocation2 [shape = 'u8[16384]{0}', space=vmem, size = 0x4000, scoped, tag = 'input window, operand 0, single buffered']
    #allocation3 [shape = 's32[1]{0}', space=sflag, size = 0x4, scoped, tag = 'scoped memory for entropy_loss.1']
    %6 = vsyncpa [#allocation3], 0
    // Predicated region
    $region2: #{entropy_loss.1} parent=1 // pred_check
      _
    $region3: #{entropy_loss.1} parent=1 // pred_check_branch
      %8 = sbr.rel (0) target = $region5
    $region4: #{entropy_loss.1} parent=1 // pred_region
      %s10 = ssub.s32 512, 512
      %11 = vsyncadd [#allocation3], %s10
      %s12 = sshll.u32 [#allocation2], 4
      %s13 = int_to_ptr.vmem [resolvable:$true] %s12
      %18 = dma.hbm_to_vmem [thread:$0]  %s0, 512, %s13, [#allocation3], 128, 128, 8
    $region5: #{entropy_loss.1} parent=1 // pred_fallthru
      _
    // Predicated region
    $region6: #{entropy_loss.1} parent=1 // pred_check
      _
    $region7: #{entropy_loss.1} parent=1 // pred_check_branch
      %20 = sbr.rel (0) target = $region9
    $region8: #{entropy_loss.1} parent=1 // pred_region
      %21 = dma.done [#allocation3], 512
    $region9: #{entropy_loss.1} parent=1 // pred_fallthru
      _
    %v22 = vld [vmem:[#allocation2] sm:$0xff]
    %v23 = vld [vmem:[#allocation2 + $0x8] sm:$0xff]
    %v24 = vld [vmem:[#allocation2 + $0x10] sm:$0xff]
    %v25 = vld [vmem:[#allocation2 + $0x18] sm:$0xff]
    %v26 = vmax.f32 %v22, %v23
    %v27 = vrot.slane %v26, 4
    %v28 = vmax.f32 %v26, %v27
    %v29 = vrot.slane %v28, 2
    %v30 = vmax.f32 %v28, %v29
    %v31 = vrot.slane %v30, 1
    %v32 = vmax.f32 %v30, %v31
    %v33 = vmax.f32 %v24, %v25
    %v34 = vrot.slane %v33, 4
    %v35 = vmax.f32 %v33, %v34
    %v36 = vrot.slane %v35, 2
    %v37 = vmax.f32 %v35, %v36
    %v38 = vrot.slane %v37, 1
    %v39 = vmax.f32 %v37, %v38
    %v40 = vsub.f32 %v22, %v32
    %v41 = vsub.f32 %v23, %v32
    %v42 = vsub.f32 %v24, %v39
    %v43 = vsub.f32 %v25, %v39
    %v44 = vmul.f32 %v40, 1.442695
    %v45 = vpow.pop %v44
    %v46 = vmul.f32 %v41, 1.442695
    %v47 = vpow.pop %v46
    %v48 = vmul.f32 %v42, 1.442695
    %v49 = vpow.pop %v48
    %v50 = vmul.f32 %v43, 1.442695
    %v51 = vpow.pop %v50
    %v52 = vadd.f32 %v45, %v47
    %v53 = vrot.slane %v52, 4
    %v54 = vadd.f32 %v52, %v53
    %v55 = vrot.slane %v54, 2
    %v56 = vadd.f32 %v54, %v55
    %v57 = vrot.slane %v56, 1
    %v58 = vadd.f32 %v56, %v57
    %v59 = vadd.f32 %v49, %v51
    %v60 = vrot.slane %v59, 4
    %v61 = vadd.f32 %v59, %v60
    %v62 = vrot.slane %v61, 2
    %v63 = vadd.f32 %v61, %v62
    %v64 = vrot.slane %v63, 1
    %v65 = vadd.f32 %v63, %v64
    %v66 = vmul.f32 %v45, %v40
    %v67 = vmul.f32 %v47, %v41
    %v68 = vmul.f32 %v49, %v42
    %v69 = vmul.f32 %v51, %v43
    %v70 = vadd.f32 %v66, %v67
    %v71 = vrot.slane %v70, 4
    %v72 = vadd.f32 %v70, %v71
    %v73 = vrot.slane %v72, 2
    %v74 = vadd.f32 %v72, %v73
    %v75 = vrot.slane %v74, 1
    %v76 = vadd.f32 %v74, %v75
    %v77 = vadd.f32 %v68, %v69
    %v78 = vrot.slane %v77, 4
    %v79 = vadd.f32 %v77, %v78
    %v80 = vrot.slane %v79, 2
    %v81 = vadd.f32 %v79, %v80
    %v82 = vrot.slane %v81, 1
    %v83 = vadd.f32 %v81, %v82
    %v84 = vlog2.pop %v58
    %v85 = vmul.f32 %v84, 0.6931472
    %v86 = vlog2.pop %v65
    %v87 = vmul.f32 %v86, 0.6931472
    %v88 = vrcp.pop %v58
    %v89 = vmul.f32 %v76, %v88
    %v90 = vrcp.pop %v65
    %v91 = vmul.f32 %v83, %v90
    %v92 = vsub.f32 %v85, %v89
    %v93 = vsub.f32 %v87, %v91
    %vm94 = vcmask 1040384
    %v95 = vsel %vm94, %v92, 0.0
    %v96 = vsel %vm94, %v93, 0.0
    %v97 = vadd.f32 %v95, %v96
    %98 = vadd.xlane.f32.xlu0 %v97
    %v99 = vpop.xlane.xlu0 %98
    %v100 = vrot.slane %v99, 4
    %v101 = vadd.f32 %v99, %v100
    %v102 = vrot.slane %v101, 2
    %v103 = vadd.f32 %v101, %v102
    %v104 = vrot.slane %v103, 1
    %v105 = vadd.f32 %v103, %v104
    %s106 = vtos %v105
    %107 = vmax.xlane.f32.xlu0 %v22
    %v108 = vpop.xlane.xlu0 %107
    %109 = vmax.xlane.f32.xlu0 %v23
    %v110 = vpop.xlane.xlu0 %109
    %111 = vmax.xlane.f32.xlu0 %v24
    %v112 = vpop.xlane.xlu0 %111
    %113 = vmax.xlane.f32.xlu0 %v25
    %v114 = vpop.xlane.xlu0 %113
    %v115 = vsub.f32 %v22, %v108
    %v116 = vsub.f32 %v23, %v110
    %v117 = vsub.f32 %v24, %v112
    %v118 = vsub.f32 %v25, %v114
    %v119 = vmul.f32 %v115, 1.442695
    %v120 = vpow.pop %v119
    %v121 = vmul.f32 %v116, 1.442695
    %v122 = vpow.pop %v121
    %v123 = vmul.f32 %v117, 1.442695
    %v124 = vpow.pop %v123
    %v125 = vmul.f32 %v118, 1.442695
    %v126 = vpow.pop %v125
    %127 = vadd.xlane.f32.xlu0 %v120
    %v128 = vpop.xlane.xlu0 %127
    %129 = vadd.xlane.f32.xlu0 %v122
    %v130 = vpop.xlane.xlu0 %129
    %131 = vadd.xlane.f32.xlu0 %v124
    %v132 = vpop.xlane.xlu0 %131
    %133 = vadd.xlane.f32.xlu0 %v126
    %v134 = vpop.xlane.xlu0 %133
    %v135 = vmul.f32 %v120, %v115
    %v136 = vmul.f32 %v122, %v116
    %v137 = vmul.f32 %v124, %v117
    %v138 = vmul.f32 %v126, %v118
    %139 = vadd.xlane.f32.xlu0 %v135
    %v140 = vpop.xlane.xlu0 %139
    %141 = vadd.xlane.f32.xlu0 %v136
    %v142 = vpop.xlane.xlu0 %141
    %143 = vadd.xlane.f32.xlu0 %v137
    %v144 = vpop.xlane.xlu0 %143
    %145 = vadd.xlane.f32.xlu0 %v138
    %v146 = vpop.xlane.xlu0 %145
    %v147 = vlog2.pop %v128
    %v148 = vmul.f32 %v147, 0.6931472
    %v149 = vlog2.pop %v130
    %v150 = vmul.f32 %v149, 0.6931472
    %v151 = vlog2.pop %v132
    %v152 = vmul.f32 %v151, 0.6931472
    %v153 = vlog2.pop %v134
    %v154 = vmul.f32 %v153, 0.6931472
    %v155 = vrcp.pop %v128
    %v156 = vmul.f32 %v140, %v155
    %v157 = vrcp.pop %v130
    %v158 = vmul.f32 %v142, %v157
    %v159 = vrcp.pop %v132
    %v160 = vmul.f32 %v144, %v159
    %v161 = vrcp.pop %v134
    %v162 = vmul.f32 %v146, %v161
    %v163 = vsub.f32 %v148, %v156
    %v164 = vsub.f32 %v150, %v158
    %v165 = vsub.f32 %v152, %v160
    %v166 = vsub.f32 %v154, %v162
    %vm167 = vcmask 7168
    %v168 = vsel %vm167, %v163, 0.0
    %v169 = vsel %vm167, %v164, 0.0
    %v170 = vadd.f32 %v168, %v169
    %v171 = vsel %vm167, %v165, 0.0
    %v172 = vadd.f32 %v170, %v171
    %v173 = vsel %vm167, %v166, 0.0
    %v174 = vadd.f32 %v172, %v173
    %175 = vadd.xlane.f32.xlu0 %v174
    %v176 = vpop.xlane.xlu0 %175
    %v177 = vrot.slane %v176, 4
    %v178 = vadd.f32 %v176, %v177
    %v179 = vrot.slane %v178, 2
    %v180 = vadd.f32 %v178, %v179
    %v181 = vrot.slane %v180, 1
    %v182 = vadd.f32 %v180, %v181
    %s183 = vtos %v182
    %v184 = vlaneseq
    %v185 = vand.u32 %v184, 127
    %vm186 = vcmp.eq.s32.totalorder %v185, 0
    %vm187 = vcmp.eq.s32.totalorder %v185, 1
    %v188 = vstv %s183
    %v189 = vsel %vm187, %v188, 0.0
    %v190 = vstv %s106
    %v191 = vsel %vm186, %v190, %v189
    %192 = vst [vmem:[%s1] sm:$0xff] %v191
    // Predicated region
    $region10: #{entropy_loss.1} parent=1 // pred_check
      _
    $region11: #{entropy_loss.1} parent=1 // pred_check_branch
      %194 = sbr.rel (0) target = $region13
    $region12: #{entropy_loss.1} parent=1 // pred_region
      _
    $region13: #{entropy_loss.1} parent=1 // pred_fallthru
      _
    // Predicated region
    $region14: #{entropy_loss.1} parent=1 // pred_check
      _
    $region15: #{entropy_loss.1} parent=1 // pred_check_branch
      %196 = sbr.rel (0) target = $region17
    $region16: #{entropy_loss.1} parent=1 // pred_region
      _
    $region17: #{entropy_loss.1} parent=1 // pred_fallthru
      _
    %197 = vsyncpa [#allocation3], 1

</llo_original>
